<compile_context>
chip_gen: v7x
topology: tpu7x:2x2x1
jax: 0.10.0
libtpu: 0.0.40
codegen_flags: <defaults>
</compile_context>

<pallas_src>
import numpy as np
import jax
import jax.numpy as jnp
from jax import lax
from jax.experimental import pallas as pl
from jax.experimental.pallas import tpu as pltpu


def _round_up(n: int, m: int) -> int:
    return ((n + m - 1) // m) * m


def _layouts(input_size, output_size, hidden_sizes):
    """K (activation-row) and N (output-column) layouts of the fused weight slab."""
    I, O, hs = input_size, output_size, list(hidden_sizes)
    L = len(hs)
    H_last = hs[-1]

    # K layout (activation slab columns): [ x | hidden[-1] | hidden[0..L-2] | ones | pad ]
    off_x = 0
    off_hlast = I
    mid_rows = []
    r = I + H_last
    for i in range(L - 1):
        mid_rows.append(r)
        r += hs[i]
    off_ones = I + sum(hs)
    K_pad = _round_up(max(I + sum(hs) + 1, 128), 128)

    # N layout (output slab columns): [ logits | newh_0 | ... | newh_{L-1} | pad ]
    col_out = [O]
    for i in range(1, L):
        col_out.append(col_out[-1] + hs[i - 1])
    N_pad = _round_up(max(O + sum(hs), 128), 128)

    return off_x, off_hlast, mid_rows, off_ones, K_pad, col_out, N_pad


def make_forward(input_size: int, output_size: int, hidden_sizes: list):
    I, O, hs = input_size, output_size, list(hidden_sizes)
    L = len(hs)
    H_last = hs[-1]
    off_x, off_hlast, mid_rows, off_ones, K_pad, col_out, N_pad = _layouts(I, O, hs)
    NW = N_pad + K_pad  # [ output slab | feedback (next-step K-layout) slab ]

    def kernel(x_ref, h0_ref, w_ref, o_ref, h_ref):
        # h_ref: VMEM-carried hidden slab in K-layout (zeros outside hidden columns).
        @pl.when(pl.program_id(0) == 0)
        def _():
            h_ref[...] = h0_ref[...]

        # Next-step activation = per-step x slab (x + ones col) + carried hidden slab.
        xh = x_ref[0] + h_ref[...]

        # Single fused MXU matmul; bias folded via the ones column.  Right half of the
        # result is the new hidden already in K-layout -> one full-ref store carries it.
        fused = jnp.dot(xh, w_ref[...],
                        preferred_element_type=jnp.float32,
                        precision=lax.Precision.HIGHEST)
        out_slab = fused[:, :N_pad]          # 128-aligned slice
        h_ref[...] = fused[:, N_pad:]        # 128-aligned slice, full-ref carry update

        # Stable log-softmax restricted to the logit lanes (cols < O); other lanes
        # (new hidden states) pass through untouched.  Single lane-dense store.
        col = lax.broadcasted_iota(jnp.int32, out_slab.shape, 1)
        is_logit = col < O
        masked = jnp.where(is_logit, out_slab, -1e30)   # inline literal (no captured const)
        m = jnp.max(masked, axis=1, keepdims=True)
        ex = jnp.exp(masked - m)                        # masked lanes underflow to 0
        lse = jnp.log(jnp.sum(ex, axis=1, keepdims=True))
        o_ref[0] = jnp.where(is_logit, out_slab - m - lse, out_slab)

    def forward_sequence(xs, hidden, w_packed):
        """xs: (T, B, I); hidden: list of L arrays (B, hs[i]).  One pallas_call for T steps."""
        xs = jnp.asarray(xs, jnp.float32)
        T, B, _ = xs.shape
        B_pad = _round_up(max(B, 8), 8)      # sublane-dense f32 tiles

        # Per-sequence activation packing (once per call, NOT per step).
        x_slab = jnp.zeros((T, B_pad, K_pad), jnp.float32)
        x_slab = x_slab.at[:, :B, :I].set(xs)
        x_slab = x_slab.at[:, :, off_ones].set(1.0)

        h0_slab = jnp.zeros((B_pad, K_pad), jnp.float32)
        h0_slab = h0_slab.at[:B, off_hlast:off_hlast + H_last].set(
            jnp.asarray(hidden[L - 1], jnp.float32))
        for i in range(L - 1):
            h0_slab = h0_slab.at[:B, mid_rows[i]:mid_rows[i] + hs[i]].set(
                jnp.asarray(hidden[i], jnp.float32))

        out = pl.pallas_call(
            kernel,
            grid=(T,),
            in_specs=[
                pl.BlockSpec((1, B_pad, K_pad), lambda t: (t, 0, 0)),   # per-step x slab
                pl.BlockSpec((B_pad, K_pad), lambda t: (0, 0)),         # initial hidden slab
                pl.BlockSpec((K_pad, NW), lambda t: (0, 0)),            # weights: VMEM-resident
            ],
            out_specs=pl.BlockSpec((1, B_pad, N_pad), lambda t: (t, 0, 0)),
            out_shape=jax.ShapeDtypeStruct((T, B_pad, N_pad), jnp.float32),
            scratch_shapes=[pltpu.VMEM((B_pad, K_pad), jnp.float32)],   # carried hidden slab
            compiler_params=pltpu.CompilerParams(
                dimension_semantics=("arbitrary",)),                    # sequential carry
        )(x_slab, h0_slab, w_packed)
        # Total resident footprint ~0.3 MiB -> no generation-specific tiling needed
        # (fits v5e/v6e/v7x VMEM trivially).

        outputs = out[:, :B, :O]                                        # (T, B, O) log-probs
        hidden_seq = [out[:, :B, c:c + h] for c, h in zip(col_out, hs)] # per-step new hidden
        return outputs, hidden_seq

    def forward(x, hidden, w_packed):
        """Exactly the PyTorch module's single-step forward(input, hidden)."""
        outputs, hidden_seq = forward_sequence(x[None], hidden, w_packed)
        return outputs[0], [h[0] for h in hidden_seq]

    return forward, forward_sequence


def init_params(key, input_size, output_size, hidden_sizes):
    """nn.Linear-style params in PyTorch (out_features, in_features) layout."""
    L = len(hidden_sizes)

    def linear(k, fan_in, fan_out):
        kw, kb = jax.random.split(k)
        bound = 1.0 / np.sqrt(fan_in)
        W = jax.random.uniform(kw, (fan_out, fan_in), jnp.float32, -bound, bound)
        b = jax.random.uniform(kb, (fan_out,), jnp.float32, -bound, bound)
        return W, b

    keys = jax.random.split(key, L + 1)
    layers = [linear(keys[0], input_size + hidden_sizes[-1], hidden_sizes[0])]
    for i in range(1, L):
        layers.append(linear(keys[i], hidden_sizes[i - 1], hidden_sizes[i]))
    out = linear(keys[L], input_size + hidden_sizes[-1], output_size)
    return {"layers": layers, "out": out}


def pack_params(params, input_size, output_size, hidden_sizes):
    """Pack all Linears into one (K_pad, N_pad + K_pad) slab (done once, host-side).

    Columns [0, N_pad): output slab  -> [ logits | newh_0 | ... | newh_{L-1} ].
    Columns [N_pad, N_pad+K_pad): feedback slab -> same new-hidden values placed at the
    K-layout column where the NEXT step reads them (hidden[i<L-1] -> mid offset,
    hidden[L-1] -> off_hlast); x / ones / pad columns stay zero.
    """
    I, O, hs = input_size, output_size, list(hidden_sizes)
    L = len(hs)
    H_last = hs[-1]
    off_x, off_hlast, mid_rows, off_ones, K_pad, col_out, N_pad = _layouts(I, O, hs)
    NW = N_pad + K_pad

    W = np.zeros((K_pad, NW), np.float32)

    def dest_k(i):
        return off_hlast if i == L - 1 else mid_rows[i]

    for i in range(L):
        Wi, bi = params["layers"][i]
        Wi = np.asarray(Wi)
        bi = np.asarray(bi)
        for base in (col_out[i], N_pad + dest_k(i)):
            if i == 0:
                # hidden layer 0: Linear(cat(x, hidden[-1]))
                W[off_x:off_x + I, base:base + hs[0]] = Wi[:, :I].T
                W[off_hlast:off_hlast + H_last, base:base + hs[0]] = Wi[:, I:].T
            else:
                # hidden layer i>0: Linear(hidden[i-1]) using the OLD hidden (PyTorch semantics)
                r = mid_rows[i - 1]
                W[r:r + hs[i - 1], base:base + hs[i]] = Wi.T
            W[off_ones, base:base + hs[i]] = bi

    # output layer: Linear(cat(x, hidden[-1]))
    Wo, bo = params["out"]
    Wo = np.asarray(Wo)
    bo = np.asarray(bo)
    W[off_x:off_x + I, 0:O] = Wo[:, :I].T
    W[off_hlast:off_hlast + H_last, 0:O] = Wo[:, I:].T
    W[off_ones, 0:O] = bo

    return jnp.asarray(W)


def reference_step(x, hidden, params):
    """Pure-JAX reference of the PyTorch forward (matmul precision pinned to match)."""
    HI = lax.Precision.HIGHEST
    combined = jnp.concatenate([x, hidden[-1]], axis=1)
    new_hidden = []
    for i, (W, b) in enumerate(params["layers"]):
        src = combined if i == 0 else hidden[i - 1]
        new_hidden.append(jnp.dot(src, W.T, precision=HI) + b)
    Wo, bo = params["out"]
    logits = jnp.dot(combined, Wo.T, precision=HI) + bo
    return jax.nn.log_softmax(logits, axis=1), new_hidden


if __name__ == "__main__":
    input_size, output_size = 16, 8
    hidden_sizes = [32, 24]
    B, T = 4, 8

    key = jax.random.PRNGKey(0)
    k_params, k_x, k_h, k_xs = jax.random.split(key, 4)
    params = init_params(k_params, input_size, output_size, hidden_sizes)
    w_packed = pack_params(params, input_size, output_size, hidden_sizes)

    forward, forward_sequence = make_forward(input_size, output_size, hidden_sizes)

    # ---- single-step check (matches LanguageDetector_RNN.forward) ----
    x = jax.random.normal(k_x, (B, input_size), jnp.float32)
    hkeys = jax.random.split(k_h, len(hidden_sizes))
    hidden = [jax.random.normal(hk, (B, h), jnp.float32)
              for hk, h in zip(hkeys, hidden_sizes)]

    out, new_hidden = forward(x, hidden, w_packed)
    out = jax.block_until_ready(out)
    new_hidden = [jax.block_until_ready(h) for h in new_hidden]

    ref_out, ref_hidden = reference_step(x, hidden, params)
    assert np.allclose(np.asarray(out), np.asarray(ref_out), atol=2e-4, rtol=2e-4)
    for a, b in zip(new_hidden, ref_hidden):
        assert np.allclose(np.asarray(a), np.asarray(b), atol=2e-4, rtol=2e-4)

    # ---- multi-step check: T RNN steps fused into ONE pallas_call ----
    xs = jax.random.normal(k_xs, (T, B, input_size), jnp.float32)
    outs, hidden_seq = forward_sequence(xs, hidden, w_packed)
    outs = jax.block_until_ready(outs)
    hidden_seq = [jax.block_until_ready(h) for h in hidden_seq]

    h_ref = hidden
    for t in range(T):
        o_ref, h_ref = reference_step(xs[t], h_ref, params)
        assert np.allclose(np.asarray(outs[t]), np.asarray(o_ref), atol=2e-4, rtol=2e-4)
        for i in range(len(hidden_sizes)):
            assert np.allclose(np.asarray(hidden_seq[i][t]), np.asarray(h_ref[i]),
                               atol=2e-4, rtol=2e-4)

    print("KERNEL_OK")
</pallas_src>

<mosaic_0001>
module attributes {stable_mosaic.version = 11 : i64} {
  func.func @kernel(%arg0: i32, %arg1: memref<1x8x128xf32, #tpu.memory_space<vmem>>, %arg2: memref<8x128xf32, #tpu.memory_space<vmem>>, %arg3: memref<128x256xf32, #tpu.memory_space<vmem>>, %arg4: memref<1x8x128xf32, #tpu.memory_space<vmem>>, %arg5: memref<8x128xf32, #tpu.memory_space<vmem>>) attributes {dimension_semantics = [#tpu.dimension_semantics<arbitrary>], iteration_bounds = array<i64: 1>, scalar_prefetch = 0 : i64, scratch_operands = 1 : i64, tpu.core_type = #tpu.core_type<tc>, window_params = [{transform_indices = @transform_0, window_bounds = array<i64: 1, 8, 128>}, {pipeline_mode = #tpu.pipeline_mode<synchronous>, transform_indices = @transform_1, window_bounds = array<i64: 8, 128>}, {pipeline_mode = #tpu.pipeline_mode<synchronous>, transform_indices = @transform_2, window_bounds = array<i64: 128, 256>}, {transform_indices = @transform_3, window_bounds = array<i64: 1, 8, 128>}]} {
    %c0_i32 = arith.constant 0 : i32
    %0 = arith.cmpi eq, %arg0, %c0_i32 : i32
    %1 = arith.extui %0 : i1 to i32
    %c0_i32_0 = arith.constant 0 : i32
    %2 = arith.cmpi ne, %1, %c0_i32_0 : i32
    scf.if %2 {
      %c0_15 = arith.constant 0 : index
      %c0_16 = arith.constant 0 : index
      %33 = vector.load %arg2[%c0_15, %c0_16] : memref<8x128xf32, #tpu.memory_space<vmem>>, vector<8x128xf32>
      %c0_17 = arith.constant 0 : index
      %c0_18 = arith.constant 0 : index
      %34 = vector.load %arg5[%c0_17, %c0_18] : memref<8x128xf32, #tpu.memory_space<vmem>>, vector<8x128xf32>
      tpu.vector_store %arg5[%c0_17, %c0_18], %33 {strides = array<i32>} : memref<8x128xf32, #tpu.memory_space<vmem>>, vector<8x128xf32>,
    } else {
    }
    %c0 = arith.constant 0 : index
    %c0_1 = arith.constant 0 : index
    %c0_2 = arith.constant 0 : index
    %3 = vector.load %arg1[%c0, %c0_1, %c0_2] : memref<1x8x128xf32, #tpu.memory_space<vmem>>, vector<1x8x128xf32>
    %4 = vector.shape_cast %3 : vector<1x8x128xf32> to vector<8x128xf32>
    %c0_3 = arith.constant 0 : index
    %c0_4 = arith.constant 0 : index
    %5 = vector.load %arg5[%c0_3, %c0_4] : memref<8x128xf32, #tpu.memory_space<vmem>>, vector<8x128xf32>
    %6 = arith.addf %4, %5 : vector<8x128xf32>
    %c0_5 = arith.constant 0 : index
    %c0_6 = arith.constant 0 : index
    %7 = vector.load %arg3[%c0_5, %c0_6] : memref<128x256xf32, #tpu.memory_space<vmem>>, vector<128x256xf32>
    %cst = arith.constant dense<0.000000e+00> : vector<8x256xf32>
    %8 = tpu.matmul %6, %7, %cst {dimension_numbers = #tpu.dot_dimension_numbers<[1], [0], [0], [1], [0, 0, 1, 1], [], []>, precision = #tpu.contract_precision<fp32>} : vector<8x128xf32>, vector<128x256xf32>, vector<8x256xf32> -> vector<8x256xf32>
    %9 = vector.extract_strided_slice %8 {offsets = [0, 0], sizes = [8, 128], strides = [1, 1]} : vector<8x256xf32> to vector<8x128xf32>
    %10 = vector.extract_strided_slice %8 {offsets = [0, 128], sizes = [8, 128], strides = [1, 1]} : vector<8x256xf32> to vector<8x128xf32>
    %c0_7 = arith.constant 0 : index
    %c0_8 = arith.constant 0 : index
    %11 = vector.load %arg5[%c0_7, %c0_8] : memref<8x128xf32, #tpu.memory_space<vmem>>, vector<8x128xf32>
    tpu.vector_store %arg5[%c0_7, %c0_8], %10 {strides = array<i32>} : memref<8x128xf32, #tpu.memory_space<vmem>>, vector<8x128xf32>,
    %12 = tpu.iota {dimensions = array<i32: 1>} : vector<8x128xi32>
    %c8_i32 = arith.constant 8 : i32
    %13 = vector.broadcast %c8_i32 : i32 to vector<8x128xi32>
    %14 = arith.cmpi slt, %12, %13 : vector<8x128xi32>
    %cst_9 = arith.constant -1.000000e+30 : f32
    %15 = vector.broadcast %cst_9 : f32 to vector<8x128xf32>
    %16 = arith.select %14, %9, %15 : vector<8x128xi1>, vector<8x128xf32>
    %cst_10 = arith.constant dense<0xFF800000> : vector<8xf32>
    %17 = vector.multi_reduction <maximumf>, %16, %cst_10 [1] : vector<8x128xf32> to vector<8xf32>
    %18 = vector.shape_cast %17 : vector<8xf32> to vector<8x1xf32>
    %19 = vector.broadcast %18 : vector<8x1xf32> to vector<8x128xf32>
    %20 = arith.subf %16, %19 : vector<8x128xf32>
    %21 = math.exp %20 : vector<8x128xf32>
    %cst_11 = arith.constant dense<0.000000e+00> : vector<8xf32>
    %22 = vector.multi_reduction <add>, %21, %cst_11 [1] : vector<8x128xf32> to vector<8xf32>
    %23 = vector.shape_cast %22 : vector<8xf32> to vector<8x1xf32>
    %24 = math.log %23 : vector<8x1xf32>
    %25 = vector.broadcast %18 : vector<8x1xf32> to vector<8x128xf32>
    %26 = arith.subf %9, %25 : vector<8x128xf32>
    %27 = vector.broadcast %24 : vector<8x1xf32> to vector<8x128xf32>
    %28 = arith.subf %26, %27 : vector<8x128xf32>
    %29 = arith.select %14, %28, %9 : vector<8x128xi1>, vector<8x128xf32>
    %c0_12 = arith.constant 0 : index
    %c0_13 = arith.constant 0 : index
    %c0_14 = arith.constant 0 : index
    %30 = vector.load %arg4[%c0_12, %c0_13, %c0_14] : memref<1x8x128xf32, #tpu.memory_space<vmem>>, vector<1x8x128xf32>
    %31 = vector.shape_cast %30 : vector<1x8x128xf32> to vector<8x128xf32>
    %32 = vector.shape_cast %29 : vector<8x128xf32> to vector<1x8x128xf32>
    tpu.vector_store %arg4[%c0_12, %c0_13, %c0_14], %32 {strides = array<i32>} : memref<1x8x128xf32, #tpu.memory_space<vmem>>, vector<1x8x128xf32>,
    return
  }
  func.func @transform_0(%arg0: i32) -> (i32, i32, i32) {
    %c0_i32 = arith.constant 0 : i32
    %c0_i32_0 = arith.constant 0 : i32
    %c0_i32_1 = arith.constant 0 : i32
    return %arg0, %c0_i32, %c0_i32_0 : i32, i32, i32
  }
  func.func @transform_1(%arg0: i32) -> (i32, i32) {
    %c0_i32 = arith.constant 0 : i32
    %c0_i32_0 = arith.constant 0 : i32
    %c0_i32_1 = arith.constant 0 : i32
    return %c0_i32, %c0_i32_0 : i32, i32
  }
  func.func @transform_2(%arg0: i32) -> (i32, i32) {
    %c0_i32 = arith.constant 0 : i32
    %c0_i32_0 = arith.constant 0 : i32
    %c0_i32_1 = arith.constant 0 : i32
    return %c0_i32, %c0_i32_0 : i32, i32
  }
  func.func @transform_3(%arg0: i32) -> (i32, i32, i32) {
    %c0_i32 = arith.constant 0 : i32
    %c0_i32_0 = arith.constant 0 : i32
    %c0_i32_1 = arith.constant 0 : i32
    return %arg0, %c0_i32, %c0_i32_0 : i32, i32, i32
  }
}

</mosaic_0001>

<llo_original>
// kernel: tpu_custom_call.1
$region0: #{tpu_custom_call.1}
  #allocation0 [shape = 'u32[]', space=smem, size = 0x4, offset = 0x4, fixed_abs, tag = 'smem constant byte address 0x4 - core index']
  #allocation1 [shape = 'u32[144,128]{1,0:T(1,128)}', space=vmem, size = 0x12000, scoped, tag = 'internal scratch']
  #allocation2 [shape = 'f32[8,128]{1,0:T(8,128)}', space=vmem, size = 0x1000, scoped, tag = 'scratch operand']
  %s0 = inlined_call_operand.hbm [shape: f32[1,8,128], index: 0, kind: input, shape index: {}]
  %s1 = inlined_call_operand.hbm [shape: f32[8,128], index: 1, kind: input, shape index: {}]
  %s2 = inlined_call_operand.hbm [shape: f32[128,256], index: 2, kind: input, shape index: {}]
  %s3 = inlined_call_operand.hbm [shape: f32[1,8,128], index: 3, kind: output, shape index: {}]
  %s4 = sld [smem:[#allocation0]]
  $region38: #{tpu_custom_call.1} parent=0
    _
  %s6 = ssub.s32 1, %s4
  %s7 = scalar_select 0, %s6, %s4
  $region1: #{tpu_custom_call.1} parent=0
    #allocation3 [shape = 'u8[4096]{0}', space=vmem, size = 0x1000, scoped, tag = 'input window, operand 0, single buffered']
    #allocation4 [shape = 's32[1]{0}', space=sflag, size = 0x4, scoped, tag = 'scoped memory for tpu_custom_call.1']
    #allocation5 [shape = 's32[1]{0}', space=sflag, size = 0x4, scoped, tag = 'scoped memory for tpu_custom_call.1']
    #allocation6 [shape = 'u8[4096]{0}', space=vmem, size = 0x1000, scoped, tag = 'input window, operand 1, single buffered']
    #allocation7 [shape = 's32[1]{0}', space=sflag, size = 0x4, scoped, tag = 'scoped memory for tpu_custom_call.1']
    #allocation8 [shape = 'u8[131072]{0}', space=vmem, size = 0x20000, scoped, tag = 'input window, operand 2, single buffered']
    #allocation9 [shape = 'u8[4096]{0}', space=vmem, size = 0x1000, scoped, tag = 'output window, operand 0, single buffered']
    %8 = vsyncpa [#allocation4], 0
    %9 = vsyncpa [#allocation7], 0
    %10 = vsyncpa [#allocation5], 0
    // Predicated region
    $region2: #{tpu_custom_call.1} parent=1 // pred_check
      _
    $region3: #{tpu_custom_call.1} parent=1 // pred_check_branch
      %12 = sbr.rel (0) target = $region5
    $region4: #{tpu_custom_call.1} parent=1 // pred_region
      %s14 = ssub.s32 128, 128
      %15 = vsyncadd [#allocation4], %s14
      %s17 = sshll.u32 [#allocation3], 4
      %s18 = int_to_ptr.vmem [resolvable:$true] %s17
      %20 = dma.hbm_to_vmem [thread:$0]  %s0, 128, %s18, [#allocation4]
    $region5: #{tpu_custom_call.1} parent=1 // pred_fallthru
      _
    // Predicated region
    $region6: #{tpu_custom_call.1} parent=1 // pred_check
      _
    $region7: #{tpu_custom_call.1} parent=1 // pred_check_branch
      %22 = sbr.rel (0) target = $region9
    $region8: #{tpu_custom_call.1} parent=1 // pred_region
      %s24 = ssub.s32 128, 128
      %25 = vsyncadd [#allocation7], %s24
      %s27 = sshll.u32 [#allocation6], 4
      %s28 = int_to_ptr.vmem [resolvable:$true] %s27
      %30 = dma.hbm_to_vmem [thread:$0]  %s1, 128, %s28, [#allocation7]
    $region9: #{tpu_custom_call.1} parent=1 // pred_fallthru
      _
    // Predicated region
    $region10: #{tpu_custom_call.1} parent=1 // pred_check
      _
    $region11: #{tpu_custom_call.1} parent=1 // pred_check_branch
      %32 = sbr.rel (0) target = $region13
    $region12: #{tpu_custom_call.1} parent=1 // pred_region
      %s34 = ssub.s32 4096, 4096
      %35 = vsyncadd [#allocation7], %s34
      %s36 = sshll.u32 [#allocation8], 4
      %s37 = int_to_ptr.vmem [resolvable:$true] %s36
      %42 = dma.hbm_to_vmem [thread:$0]  %s2, 4096, %s37, [#allocation7], 256, 256, 16
    $region13: #{tpu_custom_call.1} parent=1 // pred_fallthru
      _
    // Predicated region
    $region14: #{tpu_custom_call.1} parent=1 // pred_check
      _
    $region15: #{tpu_custom_call.1} parent=1 // pred_check_branch
      %44 = sbr.rel (0) target = $region17
    $region16: #{tpu_custom_call.1} parent=1 // pred_region
      %45 = dma.done [#allocation4], 128
    $region17: #{tpu_custom_call.1} parent=1 // pred_fallthru
      _
    // Predicated region
    $region18: #{tpu_custom_call.1} parent=1 // pred_check
      _
    $region19: #{tpu_custom_call.1} parent=1 // pred_check_branch
      %47 = sbr.rel (0) target = $region21
    $region20: #{tpu_custom_call.1} parent=1 // pred_region
      %48 = dma.done [#allocation7], 128
    $region21: #{tpu_custom_call.1} parent=1 // pred_fallthru
      _
    // Predicated region
    $region22: #{tpu_custom_call.1} parent=1 // pred_check
      _
    $region23: #{tpu_custom_call.1} parent=1 // pred_check_branch
      %50 = sbr.rel (0) target = $region25
    $region24: #{tpu_custom_call.1} parent=1 // pred_region
      %51 = dma.done [#allocation7], 4096
    $region25: #{tpu_custom_call.1} parent=1 // pred_fallthru
      _
    %p52 = scmp.eq.s32.totalorder 0, 0
    // Predicated region
    $region26: #{tpu_custom_call.1} parent=1 // pred_check
      %p53 = pneg %p52
    $region27: #{tpu_custom_call.1} parent=1 // pred_check_branch
      %55 = sbr.rel (%p53) target = $region29
    $region28: #{tpu_custom_call.1} parent=1 // pred_region
      %v56 = vld [vmem:[#allocation6] sm:$0xff]
      %57 = vst [vmem:[#allocation2] sm:$0xff] %v56
    $region29: #{tpu_custom_call.1} parent=1 // pred_fallthru
      _
    %v58 = vld [vmem:[#allocation3] sm:$0xff]
    %v59 = vld [vmem:[#allocation2] sm:$0xff]
    %v60 = vadd.f32 %v58, %v59
    %v61 = vld [vmem:[#allocation8] sm:$0xff]
    %v62 = vld [vmem:[#allocation8 + $0x8] sm:$0xff]
    %v63 = vld [vmem:[#allocation8 + $0x10] sm:$0xff]
    %v64 = vld [vmem:[#allocation8 + $0x18] sm:$0xff]
    %v65 = vld [vmem:[#allocation8 + $0x20] sm:$0xff]
    %v66 = vld [vmem:[#allocation8 + $0x28] sm:$0xff]
    %v67 = vld [vmem:[#allocation8 + $0x30] sm:$0xff]
    %v68 = vld [vmem:[#allocation8 + $0x38] sm:$0xff]
    %v69 = vld [vmem:[#allocation8 + $0x40] sm:$0xff]
    %v70 = vld [vmem:[#allocation8 + $0x48] sm:$0xff]
    %v71 = vld [vmem:[#allocation8 + $0x50] sm:$0xff]
    %v72 = vld [vmem:[#allocation8 + $0x58] sm:$0xff]
    %v73 = vld [vmem:[#allocation8 + $0x60] sm:$0xff]
    %v74 = vld [vmem:[#allocation8 + $0x68] sm:$0xff]
    %v75 = vld [vmem:[#allocation8 + $0x70] sm:$0xff]
    %v76 = vld [vmem:[#allocation8 + $0x78] sm:$0xff]
    %v77 = vld [vmem:[#allocation8 + $0x80] sm:$0xff]
    %v78 = vld [vmem:[#allocation8 + $0x88] sm:$0xff]
    %v79 = vld [vmem:[#allocation8 + $0x90] sm:$0xff]
    %v80 = vld [vmem:[#allocation8 + $0x98] sm:$0xff]
    %v81 = vld [vmem:[#allocation8 + $0xa0] sm:$0xff]
    %v82 = vld [vmem:[#allocation8 + $0xa8] sm:$0xff]
    %v83 = vld [vmem:[#allocation8 + $0xb0] sm:$0xff]
    %v84 = vld [vmem:[#allocation8 + $0xb8] sm:$0xff]
    %v85 = vld [vmem:[#allocation8 + $0xc0] sm:$0xff]
    %v86 = vld [vmem:[#allocation8 + $0xc8] sm:$0xff]
    %v87 = vld [vmem:[#allocation8 + $0xd0] sm:$0xff]
    %v88 = vld [vmem:[#allocation8 + $0xd8] sm:$0xff]
    %v89 = vld [vmem:[#allocation8 + $0xe0] sm:$0xff]
    %v90 = vld [vmem:[#allocation8 + $0xe8] sm:$0xff]
    %v91 = vld [vmem:[#allocation8 + $0xf0] sm:$0xff]
    %v92 = vld [vmem:[#allocation8 + $0xf8] sm:$0xff]
    %v93 = vand.u32 %v62, 4294901760
    %94 = vmatprep.subr.mxu0 %v93
    %v95 = vand.u32 %v61, 4294901760
    %96 = vmatpush1.msra.mxu0 %v95
    %v97 = vand.u32 %v64, 4294901760
    %98 = vmatprep.subr.mxu0 %v97
    %v99 = vand.u32 %v63, 4294901760
    %100 = vmatpush1.msra.mxu0 %v99
    %v101 = vand.u32 %v66, 4294901760
    %102 = vmatprep.subr.mxu0 %v101
    %v103 = vand.u32 %v65, 4294901760
    %104 = vmatpush1.msra.mxu0 %v103
    %v105 = vand.u32 %v68, 4294901760
    %106 = vmatprep.subr.mxu0 %v105
    %v107 = vand.u32 %v67, 4294901760
    %108 = vmatpush1.msra.mxu0 %v107
    %v109 = vand.u32 %v70, 4294901760
    %110 = vmatprep.subr.mxu0 %v109
    %v111 = vand.u32 %v69, 4294901760
    %112 = vmatpush1.msra.mxu0 %v111
    %v113 = vand.u32 %v72, 4294901760
    %114 = vmatprep.subr.mxu0 %v113
    %v115 = vand.u32 %v71, 4294901760
    %116 = vmatpush1.msra.mxu0 %v115
    %v117 = vand.u32 %v74, 4294901760
    %118 = vmatprep.subr.mxu0 %v117
    %v119 = vand.u32 %v73, 4294901760
    %120 = vmatpush1.msra.mxu0 %v119
    %v121 = vand.u32 %v76, 4294901760
    %122 = vmatprep.subr.mxu0 %v121
    %v123 = vand.u32 %v75, 4294901760
    %124 = vmatpush1.msra.mxu0 %v123
    %v125 = vand.u32 %v78, 4294901760
    %126 = vmatprep.subr.mxu0 %v125
    %v127 = vand.u32 %v77, 4294901760
    %128 = vmatpush1.msra.mxu0 %v127
    %v129 = vand.u32 %v80, 4294901760
    %130 = vmatprep.subr.mxu0 %v129
    %v131 = vand.u32 %v79, 4294901760
    %132 = vmatpush1.msra.mxu0 %v131
    %v133 = vand.u32 %v82, 4294901760
    %134 = vmatprep.subr.mxu0 %v133
    %v135 = vand.u32 %v81, 4294901760
    %136 = vmatpush1.msra.mxu0 %v135
    %v137 = vand.u32 %v84, 4294901760
    %138 = vmatprep.subr.mxu0 %v137
    %v139 = vand.u32 %v83, 4294901760
    %140 = vmatpush1.msra.mxu0 %v139
    %v141 = vand.u32 %v86, 4294901760
    %142 = vmatprep.subr.mxu0 %v141
    %v143 = vand.u32 %v85, 4294901760
    %144 = vmatpush1.msra.mxu0 %v143
    %v145 = vand.u32 %v88, 4294901760
    %146 = vmatprep.subr.mxu0 %v145
    %v147 = vand.u32 %v87, 4294901760
    %148 = vmatpush1.msra.mxu0 %v147
    %v149 = vand.u32 %v90, 4294901760
    %150 = vmatprep.subr.mxu0 %v149
    %v151 = vand.u32 %v89, 4294901760
    %152 = vmatpush1.msra.mxu0 %v151
    %v153 = vand.u32 %v92, 4294901760
    %154 = vmatprep.subr.mxu0 %v153
    %v155 = vand.u32 %v91, 4294901760
    %156 = vmatpush1.msra.mxu0 %v155
    %157 = vmatprep.subr.mxu0 0.0
    %158 = vmatpush1.msra.mxu0 0.0
    %159 = vmatprep.subr.mxu0 0.0
    %160 = vmatpush1.msra.mxu0 0.0
    %161 = vmatprep.subr.mxu0 0.0
    %162 = vmatpush1.msra.mxu0 0.0
    %163 = vmatprep.subr.mxu0 0.0
    %164 = vmatpush1.msra.mxu0 0.0
    %165 = vmatprep.subr.mxu0 0.0
    %166 = vmatpush1.msra.mxu0 0.0
    %167 = vmatprep.subr.mxu0 0.0
    %168 = vmatpush1.msra.mxu0 0.0
    %169 = vmatprep.subr.mxu0 0.0
    %170 = vmatpush1.msra.mxu0 0.0
    %171 = vmatprep.subr.mxu0 0.0
    %172 = vmatpush1.msra.mxu0 0.0
    %173 = vmatprep.subr.mxu0 0.0
    %174 = vmatpush1.msra.mxu0 0.0
    %175 = vmatprep.subr.mxu0 0.0
    %176 = vmatpush1.msra.mxu0 0.0
    %177 = vmatprep.subr.mxu0 0.0
    %178 = vmatpush1.msra.mxu0 0.0
    %179 = vmatprep.subr.mxu0 0.0
    %180 = vmatpush1.msra.mxu0 0.0
    %181 = vmatprep.subr.mxu0 0.0
    %182 = vmatpush1.msra.mxu0 0.0
    %183 = vmatprep.subr.mxu0 0.0
    %184 = vmatpush1.msra.mxu0 0.0
    %185 = vmatprep.subr.mxu0 0.0
    %186 = vmatpush1.msra.mxu0 0.0
    %187 = vmatprep.subr.mxu0 0.0
    %188 = vmatpush1.msra.mxu0 0.0
    %189 = vmatprep.mubr.f32.mxu0 0.0
    %v190 = vand.u32 %v60, 4294901760
    %v191 = vsub.f32 %v60, %v190
    %v192 = vand.u32 %v191, 4294901760
    %v193 = vsub.f32 %v191, %v192
    %v194 = vand.u32 %v193, 4294901760
    %195 = vmatmul.mubr.f32.gmra.mrb[0].mxu0 %v194
    %v196 = vpop.f32.mrb[0].mxu0
    %v197 = vadd.f32 0.0, %v196
    %v198 = vpop.f32.mrb[0].mxu0
    %v199 = vadd.f32 0.0, %v198
    %200 = vdwg.mxu0
    %v201 = vand.u32 %v62, 4294901760
    %v202 = vsub.f32 %v62, %v201
    %v203 = vand.u32 %v202, 4294901760
    %v204 = vsub.f32 %v202, %v203
    %v205 = vand.u32 %v204, 4294901760
    %206 = vmatprep.subr.mxu0 %v205
    %v207 = vand.u32 %v61, 4294901760
    %v208 = vsub.f32 %v61, %v207
    %v209 = vand.u32 %v208, 4294901760
    %v210 = vsub.f32 %v208, %v209
    %v211 = vand.u32 %v210, 4294901760
    %212 = vmatpush1.msra.mxu0 %v211
    %v213 = vand.u32 %v64, 4294901760
    %v214 = vsub.f32 %v64, %v213
    %v215 = vand.u32 %v214, 4294901760
    %v216 = vsub.f32 %v214, %v215
    %v217 = vand.u32 %v216, 4294901760
    %218 = vmatprep.subr.mxu0 %v217
    %v219 = vand.u32 %v63, 4294901760
    %v220 = vsub.f32 %v63, %v219
    %v221 = vand.u32 %v220, 4294901760
    %v222 = vsub.f32 %v220, %v221
    %v223 = vand.u32 %v222, 4294901760
    %224 = vmatpush1.msra.mxu0 %v223
    %v225 = vand.u32 %v66, 4294901760
    %v226 = vsub.f32 %v66, %v225
    %v227 = vand.u32 %v226, 4294901760
    %v228 = vsub.f32 %v226, %v227
    %v229 = vand.u32 %v228, 4294901760
    %230 = vmatprep.subr.mxu0 %v229
    %v231 = vand.u32 %v65, 4294901760
    %v232 = vsub.f32 %v65, %v231
    %v233 = vand.u32 %v232, 4294901760
    %v234 = vsub.f32 %v232, %v233
    %v235 = vand.u32 %v234, 4294901760
    %236 = vmatpush1.msra.mxu0 %v235
    %v237 = vand.u32 %v68, 4294901760
    %v238 = vsub.f32 %v68, %v237
    %v239 = vand.u32 %v238, 4294901760
    %v240 = vsub.f32 %v238, %v239
    %v241 = vand.u32 %v240, 4294901760
    %242 = vmatprep.subr.mxu0 %v241
    %v243 = vand.u32 %v67, 4294901760
    %v244 = vsub.f32 %v67, %v243
    %v245 = vand.u32 %v244, 4294901760
    %v246 = vsub.f32 %v244, %v245
    %v247 = vand.u32 %v246, 4294901760
    %248 = vmatpush1.msra.mxu0 %v247
    %v249 = vand.u32 %v70, 4294901760
    %v250 = vsub.f32 %v70, %v249
    %v251 = vand.u32 %v250, 4294901760
    %v252 = vsub.f32 %v250, %v251
    %v253 = vand.u32 %v252, 4294901760
    %254 = vmatprep.subr.mxu0 %v253
    %v255 = vand.u32 %v69, 4294901760
    %v256 = vsub.f32 %v69, %v255
    %v257 = vand.u32 %v256, 4294901760
    %v258 = vsub.f32 %v256, %v257
    %v259 = vand.u32 %v258, 4294901760
    %260 = vmatpush1.msra.mxu0 %v259
    %v261 = vand.u32 %v72, 4294901760
    %v262 = vsub.f32 %v72, %v261
    %v263 = vand.u32 %v262, 4294901760
    %v264 = vsub.f32 %v262, %v263
    %v265 = vand.u32 %v264, 4294901760
    %266 = vmatprep.subr.mxu0 %v265
    %v267 = vand.u32 %v71, 4294901760
    %v268 = vsub.f32 %v71, %v267
    %v269 = vand.u32 %v268, 4294901760
    %v270 = vsub.f32 %v268, %v269
    %v271 = vand.u32 %v270, 4294901760
    %272 = vmatpush1.msra.mxu0 %v271
    %v273 = vand.u32 %v74, 4294901760
    %v274 = vsub.f32 %v74, %v273
    %v275 = vand.u32 %v274, 4294901760
    %v276 = vsub.f32 %v274, %v275
    %v277 = vand.u32 %v276, 4294901760
    %278 = vmatprep.subr.mxu0 %v277
    %v279 = vand.u32 %v73, 4294901760
    %v280 = vsub.f32 %v73, %v279
    %v281 = vand.u32 %v280, 4294901760
    %v282 = vsub.f32 %v280, %v281
    %v283 = vand.u32 %v282, 4294901760
    %284 = vmatpush1.msra.mxu0 %v283
    %v285 = vand.u32 %v76, 4294901760
    %v286 = vsub.f32 %v76, %v285
    %v287 = vand.u32 %v286, 4294901760
    %v288 = vsub.f32 %v286, %v287
    %v289 = vand.u32 %v288, 4294901760
    %290 = vmatprep.subr.mxu0 %v289
    %v291 = vand.u32 %v75, 4294901760
    %v292 = vsub.f32 %v75, %v291
    %v293 = vand.u32 %v292, 4294901760
    %v294 = vsub.f32 %v292, %v293
    %v295 = vand.u32 %v294, 4294901760
    %296 = vmatpush1.msra.mxu0 %v295
    %v297 = vand.u32 %v78, 4294901760
    %v298 = vsub.f32 %v78, %v297
    %v299 = vand.u32 %v298, 4294901760
    %v300 = vsub.f32 %v298, %v299
    %v301 = vand.u32 %v300, 4294901760
    %302 = vmatprep.subr.mxu0 %v301
    %v303 = vand.u32 %v77, 4294901760
    %v304 = vsub.f32 %v77, %v303
    %v305 = vand.u32 %v304, 4294901760
    %v306 = vsub.f32 %v304, %v305
    %v307 = vand.u32 %v306, 4294901760
    %308 = vmatpush1.msra.mxu0 %v307
    %v309 = vand.u32 %v80, 4294901760
    %v310 = vsub.f32 %v80, %v309
    %v311 = vand.u32 %v310, 4294901760
    %v312 = vsub.f32 %v310, %v311
    %v313 = vand.u32 %v312, 4294901760
    %314 = vmatprep.subr.mxu0 %v313
    %v315 = vand.u32 %v79, 4294901760
    %v316 = vsub.f32 %v79, %v315
    %v317 = vand.u32 %v316, 4294901760
    %v318 = vsub.f32 %v316, %v317
    %v319 = vand.u32 %v318, 4294901760
    %320 = vmatpush1.msra.mxu0 %v319
    %v321 = vand.u32 %v82, 4294901760
    %v322 = vsub.f32 %v82, %v321
    %v323 = vand.u32 %v322, 4294901760
    %v324 = vsub.f32 %v322, %v323
    %v325 = vand.u32 %v324, 4294901760
    %326 = vmatprep.subr.mxu0 %v325
    %v327 = vand.u32 %v81, 4294901760
    %v328 = vsub.f32 %v81, %v327
    %v329 = vand.u32 %v328, 4294901760
    %v330 = vsub.f32 %v328, %v329
    %v331 = vand.u32 %v330, 4294901760
    %332 = vmatpush1.msra.mxu0 %v331
    %v333 = vand.u32 %v84, 4294901760
    %v334 = vsub.f32 %v84, %v333
    %v335 = vand.u32 %v334, 4294901760
    %v336 = vsub.f32 %v334, %v335
    %v337 = vand.u32 %v336, 4294901760
    %338 = vmatprep.subr.mxu0 %v337
    %v339 = vand.u32 %v83, 4294901760
    %v340 = vsub.f32 %v83, %v339
    %v341 = vand.u32 %v340, 4294901760
    %v342 = vsub.f32 %v340, %v341
    %v343 = vand.u32 %v342, 4294901760
    %344 = vmatpush1.msra.mxu0 %v343
    %v345 = vand.u32 %v86, 4294901760
    %v346 = vsub.f32 %v86, %v345
    %v347 = vand.u32 %v346, 4294901760
    %v348 = vsub.f32 %v346, %v347
    %v349 = vand.u32 %v348, 4294901760
    %350 = vmatprep.subr.mxu0 %v349
    %v351 = vand.u32 %v85, 4294901760
    %v352 = vsub.f32 %v85, %v351
    %v353 = vand.u32 %v352, 4294901760
    %v354 = vsub.f32 %v352, %v353
    %v355 = vand.u32 %v354, 4294901760
    %356 = vmatpush1.msra.mxu0 %v355
    %v357 = vand.u32 %v88, 4294901760
    %v358 = vsub.f32 %v88, %v357
    %v359 = vand.u32 %v358, 4294901760
    %v360 = vsub.f32 %v358, %v359
    %v361 = vand.u32 %v360, 4294901760
    %362 = vmatprep.subr.mxu0 %v361
    %v363 = vand.u32 %v87, 4294901760
    %v364 = vsub.f32 %v87, %v363
    %v365 = vand.u32 %v364, 4294901760
    %v366 = vsub.f32 %v364, %v365
    %v367 = vand.u32 %v366, 4294901760
    %368 = vmatpush1.msra.mxu0 %v367
    %v369 = vand.u32 %v90, 4294901760
    %v370 = vsub.f32 %v90, %v369
    %v371 = vand.u32 %v370, 4294901760
    %v372 = vsub.f32 %v370, %v371
    %v373 = vand.u32 %v372, 4294901760
    %374 = vmatprep.subr.mxu0 %v373
    %v375 = vand.u32 %v89, 4294901760
    %v376 = vsub.f32 %v89, %v375
    %v377 = vand.u32 %v376, 4294901760
    %v378 = vsub.f32 %v376, %v377
    %v379 = vand.u32 %v378, 4294901760
    %380 = vmatpush1.msra.mxu0 %v379
    %v381 = vand.u32 %v92, 4294901760
    %v382 = vsub.f32 %v92, %v381
    %v383 = vand.u32 %v382, 4294901760
    %v384 = vsub.f32 %v382, %v383
    %v385 = vand.u32 %v384, 4294901760
    %386 = vmatprep.subr.mxu0 %v385
    %v387 = vand.u32 %v91, 4294901760
    %v388 = vsub.f32 %v91, %v387
    %v389 = vand.u32 %v388, 4294901760
    %v390 = vsub.f32 %v388, %v389
    %v391 = vand.u32 %v390, 4294901760
    %392 = vmatpush1.msra.mxu0 %v391
    %393 = vmatprep.subr.mxu0 0.0
    %394 = vmatpush1.msra.mxu0 0.0
    %395 = vmatprep.subr.mxu0 0.0
    %396 = vmatpush1.msra.mxu0 0.0
    %397 = vmatprep.subr.mxu0 0.0
    %398 = vmatpush1.msra.mxu0 0.0
    %399 = vmatprep.subr.mxu0 0.0
    %400 = vmatpush1.msra.mxu0 0.0
    %401 = vmatprep.subr.mxu0 0.0
    %402 = vmatpush1.msra.mxu0 0.0
    %403 = vmatprep.subr.mxu0 0.0
    %404 = vmatpush1.msra.mxu0 0.0
    %405 = vmatprep.subr.mxu0 0.0
    %406 = vmatpush1.msra.mxu0 0.0
    %407 = vmatprep.subr.mxu0 0.0
    %408 = vmatpush1.msra.mxu0 0.0
    %409 = vmatprep.subr.mxu0 0.0
    %410 = vmatpush1.msra.mxu0 0.0
    %411 = vmatprep.subr.mxu0 0.0
    %412 = vmatpush1.msra.mxu0 0.0
    %413 = vmatprep.subr.mxu0 0.0
    %414 = vmatpush1.msra.mxu0 0.0
    %415 = vmatprep.subr.mxu0 0.0
    %416 = vmatpush1.msra.mxu0 0.0
    %417 = vmatprep.subr.mxu0 0.0
    %418 = vmatpush1.msra.mxu0 0.0
    %419 = vmatprep.subr.mxu0 0.0
    %420 = vmatpush1.msra.mxu0 0.0
    %421 = vmatprep.subr.mxu0 0.0
    %422 = vmatpush1.msra.mxu0 0.0
    %423 = vmatprep.subr.mxu0 0.0
    %424 = vmatpush1.msra.mxu0 0.0
    %425 = vmatprep.mubr.f32.mxu0 0.0
    %v426 = vand.u32 %v60, 4294901760
    %427 = vmatmul.mubr.f32.gmra.mrb[0].mxu0 %v426
    %v428 = vpop.f32.mrb[0].mxu0
    %v429 = vadd.f32 %v197, %v428
    %v430 = vpop.f32.mrb[0].mxu0
    %v431 = vadd.f32 %v199, %v430
    %432 = vdwg.mxu0
    %v433 = vand.u32 %v62, 4294901760
    %v434 = vsub.f32 %v62, %v433
    %435 = vmatprep.subr.mxu0 %v434
    %v436 = vand.u32 %v61, 4294901760
    %v437 = vsub.f32 %v61, %v436
    %438 = vmatpush1.msra.mxu0 %v437
    %v439 = vand.u32 %v64, 4294901760
    %v440 = vsub.f32 %v64, %v439
    %441 = vmatprep.subr.mxu0 %v440
    %v442 = vand.u32 %v63, 4294901760
    %v443 = vsub.f32 %v63, %v442
    %444 = vmatpush1.msra.mxu0 %v443
    %v445 = vand.u32 %v66, 4294901760
    %v446 = vsub.f32 %v66, %v445
    %447 = vmatprep.subr.mxu0 %v446
    %v448 = vand.u32 %v65, 4294901760
    %v449 = vsub.f32 %v65, %v448
    %450 = vmatpush1.msra.mxu0 %v449
    %v451 = vand.u32 %v68, 4294901760
    %v452 = vsub.f32 %v68, %v451
    %453 = vmatprep.subr.mxu0 %v452
    %v454 = vand.u32 %v67, 4294901760
    %v455 = vsub.f32 %v67, %v454
    %456 = vmatpush1.msra.mxu0 %v455
    %v457 = vand.u32 %v70, 4294901760
    %v458 = vsub.f32 %v70, %v457
    %459 = vmatprep.subr.mxu0 %v458
    %v460 = vand.u32 %v69, 4294901760
    %v461 = vsub.f32 %v69, %v460
    %462 = vmatpush1.msra.mxu0 %v461
    %v463 = vand.u32 %v72, 4294901760
    %v464 = vsub.f32 %v72, %v463
    %465 = vmatprep.subr.mxu0 %v464
    %v466 = vand.u32 %v71, 4294901760
    %v467 = vsub.f32 %v71, %v466
    %468 = vmatpush1.msra.mxu0 %v467
    %v469 = vand.u32 %v74, 4294901760
    %v470 = vsub.f32 %v74, %v469
    %471 = vmatprep.subr.mxu0 %v470
    %v472 = vand.u32 %v73, 4294901760
    %v473 = vsub.f32 %v73, %v472
    %474 = vmatpush1.msra.mxu0 %v473
    %v475 = vand.u32 %v76, 4294901760
    %v476 = vsub.f32 %v76, %v475
    %477 = vmatprep.subr.mxu0 %v476
    %v478 = vand.u32 %v75, 4294901760
    %v479 = vsub.f32 %v75, %v478
    %480 = vmatpush1.msra.mxu0 %v479
    %v481 = vand.u32 %v78, 4294901760
    %v482 = vsub.f32 %v78, %v481
    %483 = vmatprep.subr.mxu0 %v482
    %v484 = vand.u32 %v77, 4294901760
    %v485 = vsub.f32 %v77, %v484
    %486 = vmatpush1.msra.mxu0 %v485
    %v487 = vand.u32 %v80, 4294901760
    %v488 = vsub.f32 %v80, %v487
    %489 = vmatprep.subr.mxu0 %v488
    %v490 = vand.u32 %v79, 4294901760
    %v491 = vsub.f32 %v79, %v490
    %492 = vmatpush1.msra.mxu0 %v491
    %v493 = vand.u32 %v82, 4294901760
    %v494 = vsub.f32 %v82, %v493
    %495 = vmatprep.subr.mxu0 %v494
    %v496 = vand.u32 %v81, 4294901760
    %v497 = vsub.f32 %v81, %v496
    %498 = vmatpush1.msra.mxu0 %v497
    %v499 = vand.u32 %v84, 4294901760
    %v500 = vsub.f32 %v84, %v499
    %501 = vmatprep.subr.mxu0 %v500
    %v502 = vand.u32 %v83, 4294901760
    %v503 = vsub.f32 %v83, %v502
    %504 = vmatpush1.msra.mxu0 %v503
    %v505 = vand.u32 %v86, 4294901760
    %v506 = vsub.f32 %v86, %v505
    %507 = vmatprep.subr.mxu0 %v506
    %v508 = vand.u32 %v85, 4294901760
    %v509 = vsub.f32 %v85, %v508
    %510 = vmatpush1.msra.mxu0 %v509
    %v511 = vand.u32 %v88, 4294901760
    %v512 = vsub.f32 %v88, %v511
    %513 = vmatprep.subr.mxu0 %v512
    %v514 = vand.u32 %v87, 4294901760
    %v515 = vsub.f32 %v87, %v514
    %516 = vmatpush1.msra.mxu0 %v515
    %v517 = vand.u32 %v90, 4294901760
    %v518 = vsub.f32 %v90, %v517
    %519 = vmatprep.subr.mxu0 %v518
    %v520 = vand.u32 %v89, 4294901760
    %v521 = vsub.f32 %v89, %v520
    %522 = vmatpush1.msra.mxu0 %v521
    %v523 = vand.u32 %v92, 4294901760
    %v524 = vsub.f32 %v92, %v523
    %525 = vmatprep.subr.mxu0 %v524
    %v526 = vand.u32 %v91, 4294901760
    %v527 = vsub.f32 %v91, %v526
    %528 = vmatpush1.msra.mxu0 %v527
    %529 = vmatprep.subr.mxu0 0.0
    %530 = vmatpush1.msra.mxu0 0.0
    %531 = vmatprep.subr.mxu0 0.0
    %532 = vmatpush1.msra.mxu0 0.0
    %533 = vmatprep.subr.mxu0 0.0
    %534 = vmatpush1.msra.mxu0 0.0
    %535 = vmatprep.subr.mxu0 0.0
    %536 = vmatpush1.msra.mxu0 0.0
    %537 = vmatprep.subr.mxu0 0.0
    %538 = vmatpush1.msra.mxu0 0.0
    %539 = vmatprep.subr.mxu0 0.0
    %540 = vmatpush1.msra.mxu0 0.0
    %541 = vmatprep.subr.mxu0 0.0
    %542 = vmatpush1.msra.mxu0 0.0
    %543 = vmatprep.subr.mxu0 0.0
    %544 = vmatpush1.msra.mxu0 0.0
    %545 = vmatprep.subr.mxu0 0.0
    %546 = vmatpush1.msra.mxu0 0.0
    %547 = vmatprep.subr.mxu0 0.0
    %548 = vmatpush1.msra.mxu0 0.0
    %549 = vmatprep.subr.mxu0 0.0
    %550 = vmatpush1.msra.mxu0 0.0
    %551 = vmatprep.subr.mxu0 0.0
    %552 = vmatpush1.msra.mxu0 0.0
    %553 = vmatprep.subr.mxu0 0.0
    %554 = vmatpush1.msra.mxu0 0.0
    %555 = vmatprep.subr.mxu0 0.0
    %556 = vmatpush1.msra.mxu0 0.0
    %557 = vmatprep.subr.mxu0 0.0
    %558 = vmatpush1.msra.mxu0 0.0
    %559 = vmatprep.subr.mxu0 0.0
    %560 = vmatpush1.msra.mxu0 0.0
    %561 = vmatprep.mubr.f32.mxu0 0.0
    %v562 = vand.u32 %v60, 4294901760
    %v563 = vsub.f32 %v60, %v562
    %564 = vmatmul.mubr.f32.gmra.mrb[0].mxu0 %v563
    %v565 = vpop.f32.mrb[0].mxu0
    %v566 = vadd.f32 %v429, %v565
    %v567 = vpop.f32.mrb[0].mxu0
    %v568 = vadd.f32 %v431, %v567
    %569 = vdwg.mxu0
    %v570 = vand.u32 %v62, 4294901760
    %571 = vmatprep.subr.mxu0 %v570
    %v572 = vand.u32 %v61, 4294901760
    %573 = vmatpush1.msra.mxu0 %v572
    %v574 = vand.u32 %v64, 4294901760
    %575 = vmatprep.subr.mxu0 %v574
    %v576 = vand.u32 %v63, 4294901760
    %577 = vmatpush1.msra.mxu0 %v576
    %v578 = vand.u32 %v66, 4294901760
    %579 = vmatprep.subr.mxu0 %v578
    %v580 = vand.u32 %v65, 4294901760
    %581 = vmatpush1.msra.mxu0 %v580
    %v582 = vand.u32 %v68, 4294901760
    %583 = vmatprep.subr.mxu0 %v582
    %v584 = vand.u32 %v67, 4294901760
    %585 = vmatpush1.msra.mxu0 %v584
    %v586 = vand.u32 %v70, 4294901760
    %587 = vmatprep.subr.mxu0 %v586
    %v588 = vand.u32 %v69, 4294901760
    %589 = vmatpush1.msra.mxu0 %v588
    %v590 = vand.u32 %v72, 4294901760
    %591 = vmatprep.subr.mxu0 %v590
    %v592 = vand.u32 %v71, 4294901760
    %593 = vmatpush1.msra.mxu0 %v592
    %v594 = vand.u32 %v74, 4294901760
    %595 = vmatprep.subr.mxu0 %v594
    %v596 = vand.u32 %v73, 4294901760
    %597 = vmatpush1.msra.mxu0 %v596
    %v598 = vand.u32 %v76, 4294901760
    %599 = vmatprep.subr.mxu0 %v598
    %v600 = vand.u32 %v75, 4294901760
    %601 = vmatpush1.msra.mxu0 %v600
    %v602 = vand.u32 %v78, 4294901760
    %603 = vmatprep.subr.mxu0 %v602
    %v604 = vand.u32 %v77, 4294901760
    %605 = vmatpush1.msra.mxu0 %v604
    %v606 = vand.u32 %v80, 4294901760
    %607 = vmatprep.subr.mxu0 %v606
    %v608 = vand.u32 %v79, 4294901760
    %609 = vmatpush1.msra.mxu0 %v608
    %v610 = vand.u32 %v82, 4294901760
    %611 = vmatprep.subr.mxu0 %v610
    %v612 = vand.u32 %v81, 4294901760
    %613 = vmatpush1.msra.mxu0 %v612
    %v614 = vand.u32 %v84, 4294901760
    %615 = vmatprep.subr.mxu0 %v614
    %v616 = vand.u32 %v83, 4294901760
    %617 = vmatpush1.msra.mxu0 %v616
    %v618 = vand.u32 %v86, 4294901760
    %619 = vmatprep.subr.mxu0 %v618
    %v620 = vand.u32 %v85, 4294901760
    %621 = vmatpush1.msra.mxu0 %v620
    %v622 = vand.u32 %v88, 4294901760
    %623 = vmatprep.subr.mxu0 %v622
    %v624 = vand.u32 %v87, 4294901760
    %625 = vmatpush1.msra.mxu0 %v624
    %v626 = vand.u32 %v90, 4294901760
    %627 = vmatprep.subr.mxu0 %v626
    %v628 = vand.u32 %v89, 4294901760
    %629 = vmatpush1.msra.mxu0 %v628
    %v630 = vand.u32 %v92, 4294901760
    %631 = vmatprep.subr.mxu0 %v630
    %v632 = vand.u32 %v91, 4294901760
    %633 = vmatpush1.msra.mxu0 %v632
    %634 = vmatprep.subr.mxu0 0.0
    %635 = vmatpush1.msra.mxu0 0.0
    %636 = vmatprep.subr.mxu0 0.0
    %637 = vmatpush1.msra.mxu0 0.0
    %638 = vmatprep.subr.mxu0 0.0
    %639 = vmatpush1.msra.mxu0 0.0
    %640 = vmatprep.subr.mxu0 0.0
    %641 = vmatpush1.msra.mxu0 0.0
    %642 = vmatprep.subr.mxu0 0.0
    %643 = vmatpush1.msra.mxu0 0.0
    %644 = vmatprep.subr.mxu0 0.0
    %645 = vmatpush1.msra.mxu0 0.0
    %646 = vmatprep.subr.mxu0 0.0
    %647 = vmatpush1.msra.mxu0 0.0
    %648 = vmatprep.subr.mxu0 0.0
    %649 = vmatpush1.msra.mxu0 0.0
    %650 = vmatprep.subr.mxu0 0.0
    %651 = vmatpush1.msra.mxu0 0.0
    %652 = vmatprep.subr.mxu0 0.0
    %653 = vmatpush1.msra.mxu0 0.0
    %654 = vmatprep.subr.mxu0 0.0
    %655 = vmatpush1.msra.mxu0 0.0
    %656 = vmatprep.subr.mxu0 0.0
    %657 = vmatpush1.msra.mxu0 0.0
    %658 = vmatprep.subr.mxu0 0.0
    %659 = vmatpush1.msra.mxu0 0.0
    %660 = vmatprep.subr.mxu0 0.0
    %661 = vmatpush1.msra.mxu0 0.0
    %662 = vmatprep.subr.mxu0 0.0
    %663 = vmatpush1.msra.mxu0 0.0
    %664 = vmatprep.subr.mxu0 0.0
    %665 = vmatpush1.msra.mxu0 0.0
    %666 = vmatprep.mubr.f32.mxu0 0.0
    %v667 = vand.u32 %v60, 4294901760
    %v668 = vsub.f32 %v60, %v667
    %v669 = vand.u32 %v668, 4294901760
    %670 = vmatmul.mubr.f32.gmra.mrb[0].mxu0 %v669
    %v671 = vpop.f32.mrb[0].mxu0
    %v672 = vadd.f32 %v566, %v671
    %v673 = vpop.f32.mrb[0].mxu0
    %v674 = vadd.f32 %v568, %v673
    %675 = vdwg.mxu0
    %v676 = vand.u32 %v62, 4294901760
    %v677 = vsub.f32 %v62, %v676
    %v678 = vand.u32 %v677, 4294901760
    %679 = vmatprep.subr.mxu0 %v678
    %v680 = vand.u32 %v61, 4294901760
    %v681 = vsub.f32 %v61, %v680
    %v682 = vand.u32 %v681, 4294901760
    %683 = vmatpush1.msra.mxu0 %v682
    %v684 = vand.u32 %v64, 4294901760
    %v685 = vsub.f32 %v64, %v684
    %v686 = vand.u32 %v685, 4294901760
    %687 = vmatprep.subr.mxu0 %v686
    %v688 = vand.u32 %v63, 4294901760
    %v689 = vsub.f32 %v63, %v688
    %v690 = vand.u32 %v689, 4294901760
    %691 = vmatpush1.msra.mxu0 %v690
    %v692 = vand.u32 %v66, 4294901760
    %v693 = vsub.f32 %v66, %v692
    %v694 = vand.u32 %v693, 4294901760
    %695 = vmatprep.subr.mxu0 %v694
    %v696 = vand.u32 %v65, 4294901760
    %v697 = vsub.f32 %v65, %v696
    %v698 = vand.u32 %v697, 4294901760
    %699 = vmatpush1.msra.mxu0 %v698
    %v700 = vand.u32 %v68, 4294901760
    %v701 = vsub.f32 %v68, %v700
    %v702 = vand.u32 %v701, 4294901760
    %703 = vmatprep.subr.mxu0 %v702
    %v704 = vand.u32 %v67, 4294901760
    %v705 = vsub.f32 %v67, %v704
    %v706 = vand.u32 %v705, 4294901760
    %707 = vmatpush1.msra.mxu0 %v706
    %v708 = vand.u32 %v70, 4294901760
    %v709 = vsub.f32 %v70, %v708
    %v710 = vand.u32 %v709, 4294901760
    %711 = vmatprep.subr.mxu0 %v710
    %v712 = vand.u32 %v69, 4294901760
    %v713 = vsub.f32 %v69, %v712
    %v714 = vand.u32 %v713, 4294901760
    %715 = vmatpush1.msra.mxu0 %v714
    %v716 = vand.u32 %v72, 4294901760
    %v717 = vsub.f32 %v72, %v716
    %v718 = vand.u32 %v717, 4294901760
    %719 = vmatprep.subr.mxu0 %v718
    %v720 = vand.u32 %v71, 4294901760
    %v721 = vsub.f32 %v71, %v720
    %v722 = vand.u32 %v721, 4294901760
    %723 = vmatpush1.msra.mxu0 %v722
    %v724 = vand.u32 %v74, 4294901760
    %v725 = vsub.f32 %v74, %v724
    %v726 = vand.u32 %v725, 4294901760
    %727 = vmatprep.subr.mxu0 %v726
    %v728 = vand.u32 %v73, 4294901760
    %v729 = vsub.f32 %v73, %v728
    %v730 = vand.u32 %v729, 4294901760
    %731 = vmatpush1.msra.mxu0 %v730
    %v732 = vand.u32 %v76, 4294901760
    %v733 = vsub.f32 %v76, %v732
    %v734 = vand.u32 %v733, 4294901760
    %735 = vmatprep.subr.mxu0 %v734
    %v736 = vand.u32 %v75, 4294901760
    %v737 = vsub.f32 %v75, %v736
    %v738 = vand.u32 %v737, 4294901760
    %739 = vmatpush1.msra.mxu0 %v738
    %v740 = vand.u32 %v78, 4294901760
    %v741 = vsub.f32 %v78, %v740
    %v742 = vand.u32 %v741, 4294901760
    %743 = vmatprep.subr.mxu0 %v742
    %v744 = vand.u32 %v77, 4294901760
    %v745 = vsub.f32 %v77, %v744
    %v746 = vand.u32 %v745, 4294901760
    %747 = vmatpush1.msra.mxu0 %v746
    %v748 = vand.u32 %v80, 4294901760
    %v749 = vsub.f32 %v80, %v748
    %v750 = vand.u32 %v749, 4294901760
    %751 = vmatprep.subr.mxu0 %v750
    %v752 = vand.u32 %v79, 4294901760
    %v753 = vsub.f32 %v79, %v752
    %v754 = vand.u32 %v753, 4294901760
    %755 = vmatpush1.msra.mxu0 %v754
    %v756 = vand.u32 %v82, 4294901760
    %v757 = vsub.f32 %v82, %v756
    %v758 = vand.u32 %v757, 4294901760
    %759 = vmatprep.subr.mxu0 %v758
    %v760 = vand.u32 %v81, 4294901760
    %v761 = vsub.f32 %v81, %v760
    %v762 = vand.u32 %v761, 4294901760
    %763 = vmatpush1.msra.mxu0 %v762
    %v764 = vand.u32 %v84, 4294901760
    %v765 = vsub.f32 %v84, %v764
    %v766 = vand.u32 %v765, 4294901760
    %767 = vmatprep.subr.mxu0 %v766
    %v768 = vand.u32 %v83, 4294901760
    %v769 = vsub.f32 %v83, %v768
    %v770 = vand.u32 %v769, 4294901760
    %771 = vmatpush1.msra.mxu0 %v770
    %v772 = vand.u32 %v86, 4294901760
    %v773 = vsub.f32 %v86, %v772
    %v774 = vand.u32 %v773, 4294901760
    %775 = vmatprep.subr.mxu0 %v774
    %v776 = vand.u32 %v85, 4294901760
    %v777 = vsub.f32 %v85, %v776
    %v778 = vand.u32 %v777, 4294901760
    %779 = vmatpush1.msra.mxu0 %v778
    %v780 = vand.u32 %v88, 4294901760
    %v781 = vsub.f32 %v88, %v780
    %v782 = vand.u32 %v781, 4294901760
    %783 = vmatprep.subr.mxu0 %v782
    %v784 = vand.u32 %v87, 4294901760
    %v785 = vsub.f32 %v87, %v784
    %v786 = vand.u32 %v785, 4294901760
    %787 = vmatpush1.msra.mxu0 %v786
    %v788 = vand.u32 %v90, 4294901760
    %v789 = vsub.f32 %v90, %v788
    %v790 = vand.u32 %v789, 4294901760
    %791 = vmatprep.subr.mxu0 %v790
    %v792 = vand.u32 %v89, 4294901760
    %v793 = vsub.f32 %v89, %v792
    %v794 = vand.u32 %v793, 4294901760
    %795 = vmatpush1.msra.mxu0 %v794
    %v796 = vand.u32 %v92, 4294901760
    %v797 = vsub.f32 %v92, %v796
    %v798 = vand.u32 %v797, 4294901760
    %799 = vmatprep.subr.mxu0 %v798
    %v800 = vand.u32 %v91, 4294901760
    %v801 = vsub.f32 %v91, %v800
    %v802 = vand.u32 %v801, 4294901760
    %803 = vmatpush1.msra.mxu0 %v802
    %804 = vmatprep.subr.mxu0 0.0
    %805 = vmatpush1.msra.mxu0 0.0
    %806 = vmatprep.subr.mxu0 0.0
    %807 = vmatpush1.msra.mxu0 0.0
    %808 = vmatprep.subr.mxu0 0.0
    %809 = vmatpush1.msra.mxu0 0.0
    %810 = vmatprep.subr.mxu0 0.0
    %811 = vmatpush1.msra.mxu0 0.0
    %812 = vmatprep.subr.mxu0 0.0
    %813 = vmatpush1.msra.mxu0 0.0
    %814 = vmatprep.subr.mxu0 0.0
    %815 = vmatpush1.msra.mxu0 0.0
    %816 = vmatprep.subr.mxu0 0.0
    %817 = vmatpush1.msra.mxu0 0.0
    %818 = vmatprep.subr.mxu0 0.0
    %819 = vmatpush1.msra.mxu0 0.0
    %820 = vmatprep.subr.mxu0 0.0
    %821 = vmatpush1.msra.mxu0 0.0
    %822 = vmatprep.subr.mxu0 0.0
    %823 = vmatpush1.msra.mxu0 0.0
    %824 = vmatprep.subr.mxu0 0.0
    %825 = vmatpush1.msra.mxu0 0.0
    %826 = vmatprep.subr.mxu0 0.0
    %827 = vmatpush1.msra.mxu0 0.0
    %828 = vmatprep.subr.mxu0 0.0
    %829 = vmatpush1.msra.mxu0 0.0
    %830 = vmatprep.subr.mxu0 0.0
    %831 = vmatpush1.msra.mxu0 0.0
    %832 = vmatprep.subr.mxu0 0.0
    %833 = vmatpush1.msra.mxu0 0.0
    %834 = vmatprep.subr.mxu0 0.0
    %835 = vmatpush1.msra.mxu0 0.0
    %836 = vmatprep.mubr.f32.mxu0 0.0
    %v837 = vand.u32 %v60, 4294901760
    %838 = vmatmul.mubr.f32.gmra.mrb[0].mxu0 %v837
    %v839 = vpop.f32.mrb[0].mxu0
    %v840 = vadd.f32 %v672, %v839
    %v841 = vpop.f32.mrb[0].mxu0
    %v842 = vadd.f32 %v674, %v841
    %843 = vdwg.mxu0
    %v844 = vand.u32 %v62, 4294901760
    %845 = vmatprep.subr.mxu0 %v844
    %v846 = vand.u32 %v61, 4294901760
    %847 = vmatpush1.msra.mxu0 %v846
    %v848 = vand.u32 %v64, 4294901760
    %849 = vmatprep.subr.mxu0 %v848
    %v850 = vand.u32 %v63, 4294901760
    %851 = vmatpush1.msra.mxu0 %v850
    %v852 = vand.u32 %v66, 4294901760
    %853 = vmatprep.subr.mxu0 %v852
    %v854 = vand.u32 %v65, 4294901760
    %855 = vmatpush1.msra.mxu0 %v854
    %v856 = vand.u32 %v68, 4294901760
    %857 = vmatprep.subr.mxu0 %v856
    %v858 = vand.u32 %v67, 4294901760
    %859 = vmatpush1.msra.mxu0 %v858
    %v860 = vand.u32 %v70, 4294901760
    %861 = vmatprep.subr.mxu0 %v860
    %v862 = vand.u32 %v69, 4294901760
    %863 = vmatpush1.msra.mxu0 %v862
    %v864 = vand.u32 %v72, 4294901760
    %865 = vmatprep.subr.mxu0 %v864
    %v866 = vand.u32 %v71, 4294901760
    %867 = vmatpush1.msra.mxu0 %v866
    %v868 = vand.u32 %v74, 4294901760
    %869 = vmatprep.subr.mxu0 %v868
    %v870 = vand.u32 %v73, 4294901760
    %871 = vmatpush1.msra.mxu0 %v870
    %v872 = vand.u32 %v76, 4294901760
    %873 = vmatprep.subr.mxu0 %v872
    %v874 = vand.u32 %v75, 4294901760
    %875 = vmatpush1.msra.mxu0 %v874
    %v876 = vand.u32 %v78, 4294901760
    %877 = vmatprep.subr.mxu0 %v876
    %v878 = vand.u32 %v77, 4294901760
    %879 = vmatpush1.msra.mxu0 %v878
    %v880 = vand.u32 %v80, 4294901760
    %881 = vmatprep.subr.mxu0 %v880
    %v882 = vand.u32 %v79, 4294901760
    %883 = vmatpush1.msra.mxu0 %v882
    %v884 = vand.u32 %v82, 4294901760
    %885 = vmatprep.subr.mxu0 %v884
    %v886 = vand.u32 %v81, 4294901760
    %887 = vmatpush1.msra.mxu0 %v886
    %v888 = vand.u32 %v84, 4294901760
    %889 = vmatprep.subr.mxu0 %v888
    %v890 = vand.u32 %v83, 4294901760
    %891 = vmatpush1.msra.mxu0 %v890
    %v892 = vand.u32 %v86, 4294901760
    %893 = vmatprep.subr.mxu0 %v892
    %v894 = vand.u32 %v85, 4294901760
    %895 = vmatpush1.msra.mxu0 %v894
    %v896 = vand.u32 %v88, 4294901760
    %897 = vmatprep.subr.mxu0 %v896
    %v898 = vand.u32 %v87, 4294901760
    %899 = vmatpush1.msra.mxu0 %v898
    %v900 = vand.u32 %v90, 4294901760
    %901 = vmatprep.subr.mxu0 %v900
    %v902 = vand.u32 %v89, 4294901760
    %903 = vmatpush1.msra.mxu0 %v902
    %v904 = vand.u32 %v92, 4294901760
    %905 = vmatprep.subr.mxu0 %v904
    %v906 = vand.u32 %v91, 4294901760
    %907 = vmatpush1.msra.mxu0 %v906
    %908 = vmatprep.subr.mxu0 0.0
    %909 = vmatpush1.msra.mxu0 0.0
    %910 = vmatprep.subr.mxu0 0.0
    %911 = vmatpush1.msra.mxu0 0.0
    %912 = vmatprep.subr.mxu0 0.0
    %913 = vmatpush1.msra.mxu0 0.0
    %914 = vmatprep.subr.mxu0 0.0
    %915 = vmatpush1.msra.mxu0 0.0
    %916 = vmatprep.subr.mxu0 0.0
    %917 = vmatpush1.msra.mxu0 0.0
    %918 = vmatprep.subr.mxu0 0.0
    %919 = vmatpush1.msra.mxu0 0.0
    %920 = vmatprep.subr.mxu0 0.0
    %921 = vmatpush1.msra.mxu0 0.0
    %922 = vmatprep.subr.mxu0 0.0
    %923 = vmatpush1.msra.mxu0 0.0
    %924 = vmatprep.subr.mxu0 0.0
    %925 = vmatpush1.msra.mxu0 0.0
    %926 = vmatprep.subr.mxu0 0.0
    %927 = vmatpush1.msra.mxu0 0.0
    %928 = vmatprep.subr.mxu0 0.0
    %929 = vmatpush1.msra.mxu0 0.0
    %930 = vmatprep.subr.mxu0 0.0
    %931 = vmatpush1.msra.mxu0 0.0
    %932 = vmatprep.subr.mxu0 0.0
    %933 = vmatpush1.msra.mxu0 0.0
    %934 = vmatprep.subr.mxu0 0.0
    %935 = vmatpush1.msra.mxu0 0.0
    %936 = vmatprep.subr.mxu0 0.0
    %937 = vmatpush1.msra.mxu0 0.0
    %938 = vmatprep.subr.mxu0 0.0
    %939 = vmatpush1.msra.mxu0 0.0
    %940 = vmatprep.mubr.f32.mxu0 0.0
    %v941 = vand.u32 %v60, 4294901760
    %942 = vmatmul.mubr.f32.gmra.mrb[0].mxu0 %v941
    %v943 = vpop.f32.mrb[0].mxu0
    %v944 = vadd.f32 %v840, %v943
    %v945 = vpop.f32.mrb[0].mxu0
    %v946 = vadd.f32 %v842, %v945
    %947 = vdwg.mxu0
    %948 = vst [vmem:[#allocation2] sm:$0xff] %v946
    %v949 = vlaneseq
    %v950 = vand.u32 %v949, 127
    %vm951 = vcmp.lt.s32.totalorder %v950, 8
    %v952 = vsel %vm951, %v944, -1e+30
    %953 = vmax.xlane.f32.xlu0 %v952
    %v954 = vpop.xlane.xlu0 %953
    %v955 = vsub.f32 %v952, %v954
    %v956 = vmul.f32 %v955, 1.442695
    %v957 = vpow.pop %v956
    %958 = vadd.xlane.f32.xlu0 %v957
    %v959 = vpop.xlane.xlu0 %958
    %v960 = vlog2.pop %v959
    %v961 = vmul.f32 %v960, 0.6931472
    %v962 = vsub.f32 %v944, %v954
    %v963 = vsub.f32 %v962, %v961
    %v964 = vsel %vm951, %v963, %v944
    %965 = vst [vmem:[#allocation9] sm:$0xff] %v964
    // Predicated region
    $region30: #{tpu_custom_call.1} parent=1 // pred_check
      _
    $region31: #{tpu_custom_call.1} parent=1 // pred_check_branch
      %967 = sbr.rel (0) target = $region33
    $region32: #{tpu_custom_call.1} parent=1 // pred_region
      %s969 = ssub.s32 128, 128
      %970 = vsyncadd [#allocation5], %s969
      %s972 = sshll.u32 [#allocation9], 4
      %s973 = int_to_ptr.vmem [resolvable:$true] %s972
      %975 = dma.vmem_to_hbm [thread:$0]  %s973, 128, %s3, [#allocation5]
    $region33: #{tpu_custom_call.1} parent=1 // pred_fallthru
      _
    // Predicated region
    $region34: #{tpu_custom_call.1} parent=1 // pred_check
      _
    $region35: #{tpu_custom_call.1} parent=1 // pred_check_branch
      %977 = sbr.rel (0) target = $region37
    $region36: #{tpu_custom_call.1} parent=1 // pred_region
      %978 = dma.done [#allocation5], 128
    $region37: #{tpu_custom_call.1} parent=1 // pred_fallthru
      _
    %979 = vsyncpa [#allocation4], 1
    %980 = vsyncpa [#allocation7], 1
    %981 = vsyncpa [#allocation5], 1

</llo_original>
